<compile_context>
chip_gen: v7x
topology: tpu7x:2x2x1
jax: 0.10.0
libtpu: 0.0.40
codegen_flags: <defaults>
</compile_context>

<pallas_src>
import jax
import jax.numpy as jnp
from jax.experimental import pallas as pl
from jax.experimental.pallas import tpu as pltpu


def _round_up(x, m):
    return (x + m - 1) // m * m


def _make_kernel(*, query_num, d_s, d_model, bn, T, Tp):
    Q = query_num

    def kernel(x_ref, w1_ref, b1_ref, w2_ref, b2_ref, o_ref):
        # x_ref : (1, 1, d_model, Tp)   bf16   -- one (batch, head) slice
        # w1_ref: (1, Q*bn, d_model)    bf16   -- this head's layer-1 weights (queries stacked)
        # b1_ref: (1, Q*bn, 1)          f32
        # w2_ref: (1, Q, d_s, bn)       bf16   -- per-query layer-2 weights (NOT block-diagonal)
        # b2_ref: (1, Q, d_s, 1)        f32
        # o_ref : (1, 1, d_model, 2*Q)  f32    -- columns [mean_q, std_q] per query
        xf = x_ref[0, 0]                              # (d_model, Tp) bf16
        w1 = w1_ref[0]                                # (Q*bn, d_model) bf16
        b1 = b1_ref[0]                                # (Q*bn, 1) f32

        # Layer 1, fused over queries: one bf16 MXU matmul, N = Tp lanes.
        h1 = jnp.tanh(jnp.dot(w1, xf, preferred_element_type=jnp.float32) + b1)
        h1_bf = h1.astype(jnp.bfloat16)               # MXU input for layer 2

        xf32 = xf.astype(jnp.float32)                 # stats path stays f32

        if Tp != T:
            # (1, Tp) additive bias {0, -1e30}; broadcast over the d_s sublanes.
            t_idx = jax.lax.broadcasted_iota(jnp.int32, (1, Tp), 1)
            mask_bias = jnp.where(t_idx < T, jnp.float32(0.0), jnp.float32(-1e30))
        else:
            mask_bias = None

        for q in range(Q):
            # Layer 2, un-fused per query: (d_s, bn) x (bn, Tp) — no block-diag zeros.
            score = jnp.dot(w2_ref[0, q], h1_bf[q * bn:(q + 1) * bn, :],
                            preferred_element_type=jnp.float32) + b2_ref[0, q]
            if mask_bias is not None:
                score = score + mask_bias             # padded frames -> zero attention mass

            # Softmax over time (lanes), f32; denom via EUP approximate reciprocal.
            score = score - jnp.max(score, axis=-1, keepdims=True)
            e = jnp.exp(score)
            alpha = e * pl.reciprocal(jnp.sum(e, axis=-1, keepdims=True), approx=True)

            # Attentive statistics.  alpha is (d_s, Tp); d_s is 1 or d_model,
            # both broadcast correctly against xf32 (d_model, Tp).
            ax = alpha * xf32
            mean = jnp.sum(ax, axis=-1, keepdims=True)        # (d_model, 1)
            msq = jnp.sum(ax * xf32, axis=-1, keepdims=True)  # (d_model, 1)
            std = jnp.sqrt(jnp.maximum(msq - mean * mean, 1e-7))

            # Natural column stores (tile-legal out block; writeback is one slab).
            o_ref[0, 0, :, 2 * q:2 * q + 1] = mean
            o_ref[0, 0, :, 2 * q + 1:2 * q + 2] = std

    return kernel


def mqmhastp_forward(x, params, *, head_num, query_num, vmem_limit_bytes=None):
    """x: (B, F, T) or (B, C, Fr, T). Returns (B, query_num * 2 * in_dim)."""
    if x.ndim == 4:
        x = x.reshape(x.shape[0], x.shape[1] * x.shape[2], x.shape[3])
    assert x.ndim == 3
    B, F, T = x.shape
    H, Q = head_num, query_num
    assert F % H == 0
    d_model = F // H

    W1, b1, W2, b2 = params
    assert W1.shape[0] == Q and W1.shape[1] == H
    bn = W1.shape[2]
    d_s = W2.shape[2]
    assert d_s in (1, d_model)

    # Pad time to a lane multiple; padded frames get -1e30 score bias in-kernel.
    Tp = _round_up(T, 128)
    if Tp != T:
        x = jnp.pad(x, ((0, 0), (0, 0), (0, Tp - T)))
    # Free reshape (no HBM transpose); pad + bf16 cast fuse into one pass over x.
    x4 = x.reshape(B, H, d_model, Tp).astype(jnp.bfloat16)

    # Weights: layer-1 stacked over queries (one matmul); layer-2 kept per-query.
    w1_s = jnp.transpose(W1, (1, 0, 2, 3)).reshape(H, Q * bn, d_model).astype(jnp.bfloat16)
    b1_s = jnp.transpose(b1, (1, 0, 2, 3)).reshape(H, Q * bn, 1).astype(jnp.float32)
    w2_s = jnp.transpose(W2, (1, 0, 2, 3)).astype(jnp.bfloat16)          # (H, Q, d_s, bn)
    b2_s = jnp.transpose(b2, (1, 0, 2, 3)).astype(jnp.float32)           # (H, Q, d_s, 1)

    kernel = _make_kernel(query_num=Q, d_s=d_s, d_model=d_model, bn=bn, T=T, Tp=Tp)

    out = pl.pallas_call(
        kernel,
        out_shape=jax.ShapeDtypeStruct((H, B, d_model, 2 * Q), jnp.float32),
        grid_spec=pltpu.PrefetchScalarGridSpec(
            num_scalar_prefetch=0,
            grid=(H, B),   # b is the fast axis -> each head's weights DMA'd once
            in_specs=[
                # x: one (batch, head) slice, time on lanes.
                pl.BlockSpec((1, 1, d_model, Tp), lambda h, b: (b, h, 0, 0)),
                # Per-head weight blocks: only the active head is VMEM-resident.
                pl.BlockSpec((1, Q * bn, d_model), lambda h, b: (h, 0, 0)),
                pl.BlockSpec((1, Q * bn, 1), lambda h, b: (h, 0, 0)),
                pl.BlockSpec((1, Q, d_s, bn), lambda h, b: (h, 0, 0, 0)),
                pl.BlockSpec((1, Q, d_s, 1), lambda h, b: (h, 0, 0, 0)),
            ],
            out_specs=pl.BlockSpec((1, 1, d_model, 2 * Q), lambda h, b: (h, b, 0, 0)),
        ),
        compiler_params=pltpu.CompilerParams(
            dimension_semantics=("parallel", "parallel"),
            # Per-(h, b) blocks keep the per-step footprint small enough for the
            # default scoped VMEM on v5e/v6e/v7x; raise only for very long T.
            vmem_limit_bytes=vmem_limit_bytes),
    )(x4, w1_s, b1_s, w2_s, b2_s)

    # (H, B, d_model, 2*Q) -> (B, Q, H, 2, d_model) -> (B, Q * 2 * in_dim)
    out = out.reshape(H, B, d_model, Q, 2)
    out = jnp.transpose(out, (1, 3, 0, 4, 2))
    return out.reshape(B, Q * H * 2 * d_model)


def make_params(key, *, in_dim, head_num, query_num, bottleneck_dim, d_s_flag=2):
    """Deterministic parameter init. Shapes follow the PyTorch __init__:
    per (query, head): Conv1d(d_model, bn, 1) then Conv1d(bn, d_s, 1)."""
    d_model = in_dim // head_num
    d_s = d_model if d_s_flag > 1 else 1
    k1, k2, k3, k4 = jax.random.split(key, 4)
    scale1 = 1.0 / jnp.sqrt(d_model)
    scale2 = 1.0 / jnp.sqrt(bottleneck_dim)
    W1 = jax.random.uniform(
        k1, (query_num, head_num, bottleneck_dim, d_model), jnp.float32, -scale1, scale1)
    b1 = jax.random.uniform(
        k2, (query_num, head_num, bottleneck_dim, 1), jnp.float32, -scale1, scale1)
    W2 = jax.random.uniform(
        k3, (query_num, head_num, d_s, bottleneck_dim), jnp.float32, -scale2, scale2)
    b2 = jax.random.uniform(
        k4, (query_num, head_num, d_s, 1), jnp.float32, -scale2, scale2)
    return W1, b1, W2, b2


def mqmhastp_reference(x, params, *, head_num, query_num):
    """Pure-JAX f32 reference mirroring the PyTorch forward, for verification."""
    if x.ndim == 4:
        x = x.reshape(x.shape[0], x.shape[1] * x.shape[2], x.shape[3])
    B, F, T = x.shape
    d_model = F // head_num
    W1, b1, W2, b2 = params
    res = []
    for q in range(query_num):
        heads = []
        for h in range(head_num):
            chunk = x[:, h * d_model:(h + 1) * d_model, :]              # (B, d_model, T)
            h1 = jnp.tanh(jnp.einsum("ok,bkt->bot", W1[q, h], chunk) + b1[q, h][None])
            score = jnp.einsum("so,bot->bst", W2[q, h], h1) + b2[q, h][None]
            alpha = jax.nn.softmax(score, axis=-1)
            mean = jnp.sum(alpha * chunk, axis=2)
            var = jnp.sum(alpha * chunk ** 2, axis=2) - mean ** 2
            std = jnp.sqrt(jnp.maximum(var, 1e-7))
            heads.append(jnp.concatenate([mean, std], axis=1))
        res.append(jnp.concatenate(heads, axis=1))
    return jnp.concatenate(res, axis=-1)


if __name__ == "__main__":
    # Small config consistent with MQMHASTP(in_dim=32, layer_num=2, query_num=2,
    #                                        head_num=8, d_s=2, bottleneck_dim=16)
    B, C, Fr, T = 2, 4, 8, 16          # 4-D "resnet-style" input -> in_dim = 32
    in_dim = C * Fr
    head_num, query_num, bottleneck_dim = 8, 2, 16

    key = jax.random.PRNGKey(0)
    kx, kp = jax.random.split(key)
    x = jax.random.normal(kx, (B, C, Fr, T), dtype=jnp.float32)
    params = make_params(
        kp, in_dim=in_dim, head_num=head_num, query_num=query_num,
        bottleneck_dim=bottleneck_dim, d_s_flag=2,
    )

    out = mqmhastp_forward(x, params, head_num=head_num, query_num=query_num)
    out = jax.block_until_ready(out)

    ref = mqmhastp_reference(x, params, head_num=head_num, query_num=query_num)
    assert out.shape == (B, 2 * in_dim * query_num), out.shape
    max_err = float(jnp.max(jnp.abs(out - ref)))
    # Tolerance covers the bf16 MXU inputs (x, W1, W2) and the EUP approximate
    # reciprocal; all accumulation / softmax / statistics math is f32.
    assert jnp.allclose(out, ref, atol=5e-2, rtol=5e-2), max_err

    print("KERNEL_OK")
</pallas_src>

<mosaic_0001>
module attributes {stable_mosaic.version = 11 : i64} {
  func.func @kernel(%arg0: i32, %arg1: i32, %arg2: memref<1x1x4x128xbf16, #tpu.memory_space<vmem>>, %arg3: memref<1x32x4xbf16, #tpu.memory_space<vmem>>, %arg4: memref<1x32x1xf32, #tpu.memory_space<vmem>>, %arg5: memref<1x2x4x16xbf16, #tpu.memory_space<vmem>>, %arg6: memref<1x2x4x1xf32, #tpu.memory_space<vmem>>, %arg7: memref<1x1x4x4xf32, #tpu.memory_space<vmem>>) attributes {dimension_semantics = [#tpu.dimension_semantics<parallel>, #tpu.dimension_semantics<parallel>], iteration_bounds = array<i64: 8, 2>, scalar_prefetch = 0 : i64, scratch_operands = 0 : i64, tpu.core_type = #tpu.core_type<tc>, window_params = [{transform_indices = @transform_0, window_bounds = array<i64: 1, 1, 4, 128>}, {transform_indices = @transform_1, window_bounds = array<i64: 1, 32, 4>}, {transform_indices = @transform_2, window_bounds = array<i64: 1, 32, 1>}, {transform_indices = @transform_3, window_bounds = array<i64: 1, 2, 4, 16>}, {transform_indices = @transform_4, window_bounds = array<i64: 1, 2, 4, 1>}, {transform_indices = @transform_5, window_bounds = array<i64: 1, 1, 4, 4>}]} {
    %c0 = arith.constant 0 : index
    %c0_0 = arith.constant 0 : index
    %c0_1 = arith.constant 0 : index
    %c0_2 = arith.constant 0 : index
    %0 = vector.load %arg2[%c0, %c0_0, %c0_1, %c0_2] : memref<1x1x4x128xbf16, #tpu.memory_space<vmem>>, vector<1x1x4x128xbf16>
    %1 = vector.shape_cast %0 : vector<1x1x4x128xbf16> to vector<4x128xbf16>
    %c0_3 = arith.constant 0 : index
    %c0_4 = arith.constant 0 : index
    %c0_5 = arith.constant 0 : index
    %2 = vector.load %arg3[%c0_3, %c0_4, %c0_5] : memref<1x32x4xbf16, #tpu.memory_space<vmem>>, vector<1x32x4xbf16>
    %3 = vector.shape_cast %2 : vector<1x32x4xbf16> to vector<32x4xbf16>
    %c0_6 = arith.constant 0 : index
    %c0_7 = arith.constant 0 : index
    %c0_8 = arith.constant 0 : index
    %4 = vector.load %arg4[%c0_6, %c0_7, %c0_8] : memref<1x32x1xf32, #tpu.memory_space<vmem>>, vector<1x32x1xf32>
    %5 = vector.shape_cast %4 : vector<1x32x1xf32> to vector<32x1xf32>
    %cst = arith.constant dense<0.000000e+00> : vector<32x128xf32>
    %6 = tpu.matmul %3, %1, %cst {dimension_numbers = #tpu.dot_dimension_numbers<[1], [0], [0], [1], [0, 0, 1, 1], [], []>} : vector<32x4xbf16>, vector<4x128xbf16>, vector<32x128xf32> -> vector<32x128xf32>
    %7 = vector.broadcast %5 : vector<32x1xf32> to vector<32x128xf32>
    %8 = arith.addf %6, %7 : vector<32x128xf32>
    %9 = math.tanh %8 : vector<32x128xf32>
    %10 = arith.truncf %9 : vector<32x128xf32> to vector<32x128xbf16>
    %11 = arith.extf %1 : vector<4x128xbf16> to vector<4x128xf32>
    %12 = tpu.iota {dimensions = array<i32: 1>} : vector<1x128xi32>
    %c16_i32 = arith.constant 16 : i32
    %13 = vector.broadcast %c16_i32 : i32 to vector<1x128xi32>
    %14 = arith.cmpi slt, %12, %13 : vector<1x128xi32>
    %cst_9 = arith.constant 0.000000e+00 : f32
    %cst_10 = arith.constant -1.000000e+30 : f32
    %15 = vector.broadcast %cst_9 : f32 to vector<1x128xf32>
    %16 = vector.broadcast %cst_10 : f32 to vector<1x128xf32>
    %17 = arith.select %14, %15, %16 : vector<1x128xi1>, vector<1x128xf32>
    %c0_11 = arith.constant 0 : index
    %c0_12 = arith.constant 0 : index
    %c0_13 = arith.constant 0 : index
    %c0_14 = arith.constant 0 : index
    %18 = vector.load %arg5[%c0_11, %c0_12, %c0_13, %c0_14] : memref<1x2x4x16xbf16, #tpu.memory_space<vmem>>, vector<1x1x4x16xbf16>
    %19 = vector.shape_cast %18 : vector<1x1x4x16xbf16> to vector<4x16xbf16>
    %20 = vector.extract_strided_slice %10 {offsets = [0, 0], sizes = [16, 128], strides = [1, 1]} : vector<32x128xbf16> to vector<16x128xbf16>
    %cst_15 = arith.constant dense<0.000000e+00> : vector<4x128xf32>
    %21 = tpu.matmul %19, %20, %cst_15 {dimension_numbers = #tpu.dot_dimension_numbers<[1], [0], [0], [1], [0, 0, 1, 1], [], []>} : vector<4x16xbf16>, vector<16x128xbf16>, vector<4x128xf32> -> vector<4x128xf32>
    %c0_16 = arith.constant 0 : index
    %c0_17 = arith.constant 0 : index
    %c0_18 = arith.constant 0 : index
    %c0_19 = arith.constant 0 : index
    %22 = vector.load %arg6[%c0_16, %c0_17, %c0_18, %c0_19] : memref<1x2x4x1xf32, #tpu.memory_space<vmem>>, vector<1x1x4x1xf32>
    %23 = vector.shape_cast %22 : vector<1x1x4x1xf32> to vector<4x1xf32>
    %24 = vector.broadcast %23 : vector<4x1xf32> to vector<4x128xf32>
    %25 = arith.addf %21, %24 : vector<4x128xf32>
    %26 = vector.broadcast %17 : vector<1x128xf32> to vector<4x128xf32>
    %27 = arith.addf %25, %26 : vector<4x128xf32>
    %cst_20 = arith.constant dense<0xFF800000> : vector<4xf32>
    %28 = vector.multi_reduction <maximumf>, %27, %cst_20 [1] : vector<4x128xf32> to vector<4xf32>
    %29 = vector.shape_cast %28 : vector<4xf32> to vector<4x1xf32>
    %30 = vector.broadcast %29 : vector<4x1xf32> to vector<4x128xf32>
    %31 = arith.subf %27, %30 : vector<4x128xf32>
    %32 = math.exp %31 : vector<4x128xf32>
    %cst_21 = arith.constant dense<0.000000e+00> : vector<4xf32>
    %33 = vector.multi_reduction <add>, %32, %cst_21 [1] : vector<4x128xf32> to vector<4xf32>
    %34 = vector.shape_cast %33 : vector<4xf32> to vector<4x1xf32>
    %35 = tpu.reciprocal %34 {approx = true} : vector<4x1xf32> -> vector<4x1xf32>
    %36 = vector.broadcast %35 : vector<4x1xf32> to vector<4x128xf32>
    %37 = arith.mulf %32, %36 : vector<4x128xf32>
    %38 = arith.mulf %37, %11 : vector<4x128xf32>
    %cst_22 = arith.constant dense<0.000000e+00> : vector<4xf32>
    %39 = vector.multi_reduction <add>, %38, %cst_22 [1] : vector<4x128xf32> to vector<4xf32>
    %40 = vector.shape_cast %39 : vector<4xf32> to vector<4x1xf32>
    %41 = arith.mulf %38, %11 : vector<4x128xf32>
    %cst_23 = arith.constant dense<0.000000e+00> : vector<4xf32>
    %42 = vector.multi_reduction <add>, %41, %cst_23 [1] : vector<4x128xf32> to vector<4xf32>
    %43 = vector.shape_cast %42 : vector<4xf32> to vector<4x1xf32>
    %44 = arith.mulf %40, %40 : vector<4x1xf32>
    %45 = arith.subf %43, %44 : vector<4x1xf32>
    %cst_24 = arith.constant 1.000000e-07 : f32
    %46 = vector.broadcast %cst_24 : f32 to vector<4x1xf32>
    %47 = arith.maximumf %45, %46 : vector<4x1xf32>
    %48 = math.sqrt %47 : vector<4x1xf32>
    %c0_25 = arith.constant 0 : index
    %c0_26 = arith.constant 0 : index
    %c0_27 = arith.constant 0 : index
    %c0_28 = arith.constant 0 : index
    %49 = vector.load %arg7[%c0_25, %c0_26, %c0_27, %c0_28] : memref<1x1x4x4xf32, #tpu.memory_space<vmem>>, vector<1x1x4x1xf32>
    %50 = vector.shape_cast %49 : vector<1x1x4x1xf32> to vector<4x1xf32>
    %51 = vector.shape_cast %40 : vector<4x1xf32> to vector<1x1x4x1xf32>
    tpu.vector_store %arg7[%c0_25, %c0_26, %c0_27, %c0_28], %51 {strides = array<i32>} : memref<1x1x4x4xf32, #tpu.memory_space<vmem>>, vector<1x1x4x1xf32>,
    %c0_29 = arith.constant 0 : index
    %c0_30 = arith.constant 0 : index
    %c0_31 = arith.constant 0 : index
    %c1 = arith.constant 1 : index
    %52 = vector.load %arg7[%c0_29, %c0_30, %c0_31, %c1] : memref<1x1x4x4xf32, #tpu.memory_space<vmem>>, vector<1x1x4x1xf32>
    %53 = vector.shape_cast %52 : vector<1x1x4x1xf32> to vector<4x1xf32>
    %54 = vector.shape_cast %48 : vector<4x1xf32> to vector<1x1x4x1xf32>
    tpu.vector_store %arg7[%c0_29, %c0_30, %c0_31, %c1], %54 {strides = array<i32>} : memref<1x1x4x4xf32, #tpu.memory_space<vmem>>, vector<1x1x4x1xf32>,
    %c0_32 = arith.constant 0 : index
    %c1_33 = arith.constant 1 : index
    %c0_34 = arith.constant 0 : index
    %c0_35 = arith.constant 0 : index
    %55 = vector.load %arg5[%c0_32, %c1_33, %c0_34, %c0_35] : memref<1x2x4x16xbf16, #tpu.memory_space<vmem>>, vector<1x1x4x16xbf16>
    %56 = vector.shape_cast %55 : vector<1x1x4x16xbf16> to vector<4x16xbf16>
    %57 = vector.extract_strided_slice %10 {offsets = [16, 0], sizes = [16, 128], strides = [1, 1]} : vector<32x128xbf16> to vector<16x128xbf16>
    %cst_36 = arith.constant dense<0.000000e+00> : vector<4x128xf32>
    %58 = tpu.matmul %56, %57, %cst_36 {dimension_numbers = #tpu.dot_dimension_numbers<[1], [0], [0], [1], [0, 0, 1, 1], [], []>} : vector<4x16xbf16>, vector<16x128xbf16>, vector<4x128xf32> -> vector<4x128xf32>
    %c0_37 = arith.constant 0 : index
    %c1_38 = arith.constant 1 : index
    %c0_39 = arith.constant 0 : index
    %c0_40 = arith.constant 0 : index
    %59 = vector.load %arg6[%c0_37, %c1_38, %c0_39, %c0_40] : memref<1x2x4x1xf32, #tpu.memory_space<vmem>>, vector<1x1x4x1xf32>
    %60 = vector.shape_cast %59 : vector<1x1x4x1xf32> to vector<4x1xf32>
    %61 = vector.broadcast %60 : vector<4x1xf32> to vector<4x128xf32>
    %62 = arith.addf %58, %61 : vector<4x128xf32>
    %63 = vector.broadcast %17 : vector<1x128xf32> to vector<4x128xf32>
    %64 = arith.addf %62, %63 : vector<4x128xf32>
    %cst_41 = arith.constant dense<0xFF800000> : vector<4xf32>
    %65 = vector.multi_reduction <maximumf>, %64, %cst_41 [1] : vector<4x128xf32> to vector<4xf32>
    %66 = vector.shape_cast %65 : vector<4xf32> to vector<4x1xf32>
    %67 = vector.broadcast %66 : vector<4x1xf32> to vector<4x128xf32>
    %68 = arith.subf %64, %67 : vector<4x128xf32>
    %69 = math.exp %68 : vector<4x128xf32>
    %cst_42 = arith.constant dense<0.000000e+00> : vector<4xf32>
    %70 = vector.multi_reduction <add>, %69, %cst_42 [1] : vector<4x128xf32> to vector<4xf32>
    %71 = vector.shape_cast %70 : vector<4xf32> to vector<4x1xf32>
    %72 = tpu.reciprocal %71 {approx = true} : vector<4x1xf32> -> vector<4x1xf32>
    %73 = vector.broadcast %72 : vector<4x1xf32> to vector<4x128xf32>
    %74 = arith.mulf %69, %73 : vector<4x128xf32>
    %75 = arith.mulf %74, %11 : vector<4x128xf32>
    %cst_43 = arith.constant dense<0.000000e+00> : vector<4xf32>
    %76 = vector.multi_reduction <add>, %75, %cst_43 [1] : vector<4x128xf32> to vector<4xf32>
    %77 = vector.shape_cast %76 : vector<4xf32> to vector<4x1xf32>
    %78 = arith.mulf %75, %11 : vector<4x128xf32>
    %cst_44 = arith.constant dense<0.000000e+00> : vector<4xf32>
    %79 = vector.multi_reduction <add>, %78, %cst_44 [1] : vector<4x128xf32> to vector<4xf32>
    %80 = vector.shape_cast %79 : vector<4xf32> to vector<4x1xf32>
    %81 = arith.mulf %77, %77 : vector<4x1xf32>
    %82 = arith.subf %80, %81 : vector<4x1xf32>
    %cst_45 = arith.constant 1.000000e-07 : f32
    %83 = vector.broadcast %cst_45 : f32 to vector<4x1xf32>
    %84 = arith.maximumf %82, %83 : vector<4x1xf32>
    %85 = math.sqrt %84 : vector<4x1xf32>
    %c0_46 = arith.constant 0 : index
    %c0_47 = arith.constant 0 : index
    %c0_48 = arith.constant 0 : index
    %c2 = arith.constant 2 : index
    %86 = vector.load %arg7[%c0_46, %c0_47, %c0_48, %c2] : memref<1x1x4x4xf32, #tpu.memory_space<vmem>>, vector<1x1x4x1xf32>
    %87 = vector.shape_cast %86 : vector<1x1x4x1xf32> to vector<4x1xf32>
    %88 = vector.shape_cast %77 : vector<4x1xf32> to vector<1x1x4x1xf32>
    tpu.vector_store %arg7[%c0_46, %c0_47, %c0_48, %c2], %88 {strides = array<i32>} : memref<1x1x4x4xf32, #tpu.memory_space<vmem>>, vector<1x1x4x1xf32>,
    %c0_49 = arith.constant 0 : index
    %c0_50 = arith.constant 0 : index
    %c0_51 = arith.constant 0 : index
    %c3 = arith.constant 3 : index
    %89 = vector.load %arg7[%c0_49, %c0_50, %c0_51, %c3] : memref<1x1x4x4xf32, #tpu.memory_space<vmem>>, vector<1x1x4x1xf32>
    %90 = vector.shape_cast %89 : vector<1x1x4x1xf32> to vector<4x1xf32>
    %91 = vector.shape_cast %85 : vector<4x1xf32> to vector<1x1x4x1xf32>
    tpu.vector_store %arg7[%c0_49, %c0_50, %c0_51, %c3], %91 {strides = array<i32>} : memref<1x1x4x4xf32, #tpu.memory_space<vmem>>, vector<1x1x4x1xf32>,
    return
  }
  func.func @transform_0(%arg0: i32, %arg1: i32) -> (i32, i32, i32, i32) {
    %c0_i32 = arith.constant 0 : i32
    %c0_i32_0 = arith.constant 0 : i32
    %c0_i32_1 = arith.constant 0 : i32
    return %arg1, %arg0, %c0_i32, %c0_i32_0 : i32, i32, i32, i32
  }
  func.func @transform_1(%arg0: i32, %arg1: i32) -> (i32, i32, i32) {
    %c0_i32 = arith.constant 0 : i32
    %c0_i32_0 = arith.constant 0 : i32
    %c0_i32_1 = arith.constant 0 : i32
    return %arg0, %c0_i32, %c0_i32_0 : i32, i32, i32
  }
  func.func @transform_2(%arg0: i32, %arg1: i32) -> (i32, i32, i32) {
    %c0_i32 = arith.constant 0 : i32
    %c0_i32_0 = arith.constant 0 : i32
    %c0_i32_1 = arith.constant 0 : i32
    return %arg0, %c0_i32, %c0_i32_0 : i32, i32, i32
  }
  func.func @transform_3(%arg0: i32, %arg1: i32) -> (i32, i32, i32, i32) {
    %c0_i32 = arith.constant 0 : i32
    %c0_i32_0 = arith.constant 0 : i32
    %c0_i32_1 = arith.constant 0 : i32
    %c0_i32_2 = arith.constant 0 : i32
    return %arg0, %c0_i32, %c0_i32_0, %c0_i32_1 : i32, i32, i32, i32
  }
  func.func @transform_4(%arg0: i32, %arg1: i32) -> (i32, i32, i32, i32) {
    %c0_i32 = arith.constant 0 : i32
    %c0_i32_0 = arith.constant 0 : i32
    %c0_i32_1 = arith.constant 0 : i32
    %c0_i32_2 = arith.constant 0 : i32
    return %arg0, %c0_i32, %c0_i32_0, %c0_i32_1 : i32, i32, i32, i32
  }
  func.func @transform_5(%arg0: i32, %arg1: i32) -> (i32, i32, i32, i32) {
    %c0_i32 = arith.constant 0 : i32
    %c0_i32_0 = arith.constant 0 : i32
    %c0_i32_1 = arith.constant 0 : i32
    return %arg0, %arg1, %c0_i32, %c0_i32_0 : i32, i32, i32, i32
  }
}

</mosaic_0001>

<llo_original>
// kernel: tpu_custom_call.1
$region0: #{tpu_custom_call.1}
  #allocation0 [shape = 'u32[]', space=smem, size = 0x4, offset = 0x4, fixed_abs, tag = 'smem constant byte address 0x4 - core index']
  #allocation1 [shape = 'u32[144,128]{1,0:T(1,128)}', space=vmem, size = 0x12000, scoped, tag = 'internal scratch']
  %s0 = inlined_call_operand.vmem [shape: bf16[2,8,4,128], index: 0, kind: input, shape index: {}]
  %s1 = inlined_call_operand.vmem [shape: bf16[8,32,4], index: 1, kind: input, shape index: {}]
  %s2 = inlined_call_operand.vmem [shape: f32[8,32,1], index: 2, kind: input, shape index: {}]
  %s3 = inlined_call_operand.vmem [shape: bf16[8,2,4,16], index: 3, kind: input, shape index: {}]
  %s4 = inlined_call_operand.vmem [shape: f32[8,2,4,1], index: 4, kind: input, shape index: {}]
  %s5 = inlined_call_operand.vmem [shape: f32[8,2,4,4], index: 5, kind: output, shape index: {}]
  %s6 = sld [smem:[#allocation0]]
  $region53: #{tpu_custom_call.1} parent=0
    _
  %s8 = ssub.s32 1, %s6
  %s9 = scalar_select 0, %s8, %s6
  loop: start=0, step=1, limit=18
  $region2: #{tpu_custom_call.1} parent=0 // loop_pre_header
    _
  $region3: #{tpu_custom_call.1} parent=0 // loop_header
    %s11 = sphi 0, %s15
    %p12 = scmp.ge.s32.totalorder %s11, 18
    %s18 = sphi 0, %s30
    %s19 = sphi 0, %s26
    %s20 = sphi 0, %s18
    %s21 = sphi 0, %s19
    %s22 = sphi 0, %s20
    %s23 = sphi 0, %s21
    %s35 = sphi 0, %s37
    %s38 = sphi 0, %s35
    %s39 = sphi 0, %s38
    %s55 = sphi 0, %s39
    %s61 = sphi 0, %s63
    %s64 = sphi 0, %s61
    %s65 = sphi 0, %s64
    %s81 = sphi 0, %s65
    %s87 = sphi 0, %s89
    %s90 = sphi 0, %s87
    %s91 = sphi 0, %s90
    %s107 = sphi 0, %s91
    %s113 = sphi 0, %s115
    %s116 = sphi 0, %s113
    %s117 = sphi 0, %s116
    %s133 = sphi 0, %s117
    %s139 = sphi 0, %s141
    %s142 = sphi 0, %s139
    %s143 = sphi 0, %s142
    %s159 = sphi 0, %s143
    %s167 = sphi 0, %s169
    %s170 = sphi 0, %s167
    %s171 = sphi 0, %s170
    %s187 = sphi 0, %s171
  $region4: #{tpu_custom_call.1} parent=0 // loop_header_branch
    %14 = sbr.rel (%p12) target = $region8
  $region5: #{tpu_custom_call.1} parent=0 // loop_body
    %s16 = ssub.s32 %s11, 1
    %s17 = ssub.s32 %s11, 2
    %s24 = sadd.s32 1, %s19
    %p25 = scmp.ge.s32.totalorder %s24, 2
    %s26 = scalar_select %p25, 0, %s24
    %s27 = sadd.s32 1, %s18
    %s28 = scalar_select %p25, %s27, %s18
    %p29 = scmp.ge.s32.totalorder %s28, 8
    %s30 = scalar_select %p29, 0, %s28
    %s31 = ssub.s32 %s19, %s26
    %s32 = ssub.s32 %s18, %s30
    %s33 = sor.u32 %s31, %s32
    %p34 = scmp.eq.s32.totalorder %s33, 0
    %s36 = sadd.s32 %s35, 1
    %s37 = scalar_select %p34, %s35, %s36
    %p40 = pneg %p34
    %p41 = scmp.eq.s32.totalorder %s11, 15
    %p42 = por %p40, %p41
    %p43 = scmp.ne.s32.totalorder %s35, %s38
    %p44 = scmp.eq.s32.totalorder %s11, 0
    %p45 = por %p43, %p44
    %p46 = scmp.ne.s32.totalorder %s35, %s38
    %p47 = scmp.eq.s32.totalorder %s16, 15
    %p48 = por %p46, %p47
    %p49 = scmp.ne.s32.totalorder %s38, %s39
    %p50 = scmp.eq.s32.totalorder %s16, 0
    %p51 = por %p49, %p50
    %p52 = scmp.ne.s32.totalorder %s38, %s39
    %p53 = scmp.eq.s32.totalorder %s17, 15
    %p54 = por %p52, %p53
    %p56 = scmp.ne.s32.totalorder %s39, %s55
    %p57 = scmp.eq.s32.totalorder %s17, 0
    %p58 = por %p56, %p57
    %s59 = ssub.s32 %s18, %s30
    %p60 = scmp.eq.s32.totalorder %s59, 0
    %s62 = sadd.s32 %s61, 1
    %s63 = scalar_select %p60, %s61, %s62
    %p66 = pneg %p60
    %p67 = scmp.eq.s32.totalorder %s11, 15
    %p68 = por %p66, %p67
    %p69 = scmp.ne.s32.totalorder %s61, %s64
    %p70 = scmp.eq.s32.totalorder %s11, 0
    %p71 = por %p69, %p70
    %p72 = scmp.ne.s32.totalorder %s61, %s64
    %p73 = scmp.eq.s32.totalorder %s16, 15
    %p74 = por %p72, %p73
    %p75 = scmp.ne.s32.totalorder %s64, %s65
    %p76 = scmp.eq.s32.totalorder %s16, 0
    %p77 = por %p75, %p76
    %p78 = scmp.ne.s32.totalorder %s64, %s65
    %p79 = scmp.eq.s32.totalorder %s17, 15
    %p80 = por %p78, %p79
    %p82 = scmp.ne.s32.totalorder %s65, %s81
    %p83 = scmp.eq.s32.totalorder %s17, 0
    %p84 = por %p82, %p83
    %s85 = ssub.s32 %s18, %s30
    %p86 = scmp.eq.s32.totalorder %s85, 0
    %s88 = sadd.s32 %s87, 1
    %s89 = scalar_select %p86, %s87, %s88
    %p92 = pneg %p86
    %p93 = scmp.eq.s32.totalorder %s11, 15
    %p94 = por %p92, %p93
    %p95 = scmp.ne.s32.totalorder %s87, %s90
    %p96 = scmp.eq.s32.totalorder %s11, 0
    %p97 = por %p95, %p96
    %p98 = scmp.ne.s32.totalorder %s87, %s90
    %p99 = scmp.eq.s32.totalorder %s16, 15
    %p100 = por %p98, %p99
    %p101 = scmp.ne.s32.totalorder %s90, %s91
    %p102 = scmp.eq.s32.totalorder %s16, 0
    %p103 = por %p101, %p102
    %p104 = scmp.ne.s32.totalorder %s90, %s91
    %p105 = scmp.eq.s32.totalorder %s17, 15
    %p106 = por %p104, %p105
    %p108 = scmp.ne.s32.totalorder %s91, %s107
    %p109 = scmp.eq.s32.totalorder %s17, 0
    %p110 = por %p108, %p109
    %s111 = ssub.s32 %s18, %s30
    %p112 = scmp.eq.s32.totalorder %s111, 0
    %s114 = sadd.s32 %s113, 1
    %s115 = scalar_select %p112, %s113, %s114
    %p118 = pneg %p112
    %p119 = scmp.eq.s32.totalorder %s11, 15
    %p120 = por %p118, %p119
    %p121 = scmp.ne.s32.totalorder %s113, %s116
    %p122 = scmp.eq.s32.totalorder %s11, 0
    %p123 = por %p121, %p122
    %p124 = scmp.ne.s32.totalorder %s113, %s116
    %p125 = scmp.eq.s32.totalorder %s16, 15
    %p126 = por %p124, %p125
    %p127 = scmp.ne.s32.totalorder %s116, %s117
    %p128 = scmp.eq.s32.totalorder %s16, 0
    %p129 = por %p127, %p128
    %p130 = scmp.ne.s32.totalorder %s116, %s117
    %p131 = scmp.eq.s32.totalorder %s17, 15
    %p132 = por %p130, %p131
    %p134 = scmp.ne.s32.totalorder %s117, %s133
    %p135 = scmp.eq.s32.totalorder %s17, 0
    %p136 = por %p134, %p135
    %s137 = ssub.s32 %s18, %s30
    %p138 = scmp.eq.s32.totalorder %s137, 0
    %s140 = sadd.s32 %s139, 1
    %s141 = scalar_select %p138, %s139, %s140
    %p144 = pneg %p138
    %p145 = scmp.eq.s32.totalorder %s11, 15
    %p146 = por %p144, %p145
    %p147 = scmp.ne.s32.totalorder %s139, %s142
    %p148 = scmp.eq.s32.totalorder %s11, 0
    %p149 = por %p147, %p148
    %p150 = scmp.ne.s32.totalorder %s139, %s142
    %p151 = scmp.eq.s32.totalorder %s16, 15
    %p152 = por %p150, %p151
    %p153 = scmp.ne.s32.totalorder %s142, %s143
    %p154 = scmp.eq.s32.totalorder %s16, 0
    %p155 = por %p153, %p154
    %p156 = scmp.ne.s32.totalorder %s142, %s143
    %p157 = scmp.eq.s32.totalorder %s17, 15
    %p158 = por %p156, %p157
    %p160 = scmp.ne.s32.totalorder %s143, %s159
    %p161 = scmp.eq.s32.totalorder %s17, 0
    %p162 = por %p160, %p161
    %s163 = ssub.s32 %s18, %s30
    %s164 = ssub.s32 %s19, %s26
    %s165 = sor.u32 %s163, %s164
    %p166 = scmp.eq.s32.totalorder %s165, 0
    %s168 = sadd.s32 %s167, 1
    %s169 = scalar_select %p166, %s167, %s168
    %p172 = pneg %p166
    %p173 = scmp.eq.s32.totalorder %s11, 15
    %p174 = por %p172, %p173
    %p175 = scmp.ne.s32.totalorder %s167, %s170
    %p176 = scmp.eq.s32.totalorder %s11, 0
    %p177 = por %p175, %p176
    %p178 = scmp.ne.s32.totalorder %s167, %s170
    %p179 = scmp.eq.s32.totalorder %s16, 15
    %p180 = por %p178, %p179
    %p181 = scmp.ne.s32.totalorder %s170, %s171
    %p182 = scmp.eq.s32.totalorder %s16, 0
    %p183 = por %p181, %p182
    %p184 = scmp.ne.s32.totalorder %s170, %s171
    %p185 = scmp.eq.s32.totalorder %s17, 15
    %p186 = por %p184, %p185
    %p188 = scmp.ne.s32.totalorder %s171, %s187
    %p189 = scmp.eq.s32.totalorder %s17, 0
    %p190 = por %p188, %p189
    %p191 = scmp.le.s32.totalorder 1, %s11
    %p192 = scmp.lt.s32.totalorder %s11, 17
    %p193 = pnand %p191, %p192
    %p194 = pneg %p193
    // Predicated region
    $region9: #{tpu_custom_call.1} parent=5 // pred_check
      _
    $region10: #{tpu_custom_call.1} parent=5 // pred_check_branch
      %196 = sbr.rel (%p193) target = $region12
    $region11: #{tpu_custom_call.1} parent=5 // pred_region
      %s197 = ssub.s32 %s11, 1
    $region12: #{tpu_custom_call.1} parent=5 // pred_fallthru
      _
    %p198 = scmp.lt.s32.totalorder %s11, 16
    // Predicated region
    $region13: #{tpu_custom_call.1} parent=5 // pred_check
      %p199 = pneg %p198
    $region14: #{tpu_custom_call.1} parent=5 // pred_check_branch
      %201 = sbr.rel (%p199) target = $region16
    $region15: #{tpu_custom_call.1} parent=5 // pred_region
      // Predicated region
      $region17: #{tpu_custom_call.1} parent=15 // pred_check
        %p202 = pneg %p45
      $region18: #{tpu_custom_call.1} parent=15 // pred_check_branch
        %204 = sbr.rel (%p202) target = $region20
      $region19: #{tpu_custom_call.1} parent=15 // pred_region
        %p205 = scmp.lt.s32.totalorder %s19, 1
        %s206 = scalar_select %p205, %s19, 1
        %p207 = scmp.lt.s32.totalorder %s18, 7
        %s208 = scalar_select %p207, %s18, 7
        %s209 = smul.addr %s206, 8
        %s210 = sadd.s32 %s208, %s209
        %s211 = smul.addr %s210, 2
        %s212 = scalar_lea.vmem %s0, %s211
      $region20: #{tpu_custom_call.1} parent=15 // pred_fallthru
        _
      // Predicated region
      $region21: #{tpu_custom_call.1} parent=15 // pred_check
        %p213 = pneg %p71
      $region22: #{tpu_custom_call.1} parent=15 // pred_check_branch
        %215 = sbr.rel (%p213) target = $region24
      $region23: #{tpu_custom_call.1} parent=15 // pred_region
        %p216 = scmp.lt.s32.totalorder %s18, 7
        %s217 = scalar_select %p216, %s18, 7
        %s218 = smul.addr %s217, 4
        %s219 = smul.addr %s218, 4
        %s220 = scalar_lea.vmem %s1, %s219
      $region24: #{tpu_custom_call.1} parent=15 // pred_fallthru
        _
      // Predicated region
      $region25: #{tpu_custom_call.1} parent=15 // pred_check
        %p221 = pneg %p97
      $region26: #{tpu_custom_call.1} parent=15 // pred_check_branch
        %223 = sbr.rel (%p221) target = $region28
      $region27: #{tpu_custom_call.1} parent=15 // pred_region
        %p224 = scmp.lt.s32.totalorder %s18, 7
        %s225 = scalar_select %p224, %s18, 7
        %s226 = smul.addr %s225, 4
        %s227 = smul.addr %s226, 8
        %s228 = scalar_lea.vmem %s2, %s227
      $region28: #{tpu_custom_call.1} parent=15 // pred_fallthru
        _
      // Predicated region
      $region29: #{tpu_custom_call.1} parent=15 // pred_check
        %p229 = pneg %p123
      $region30: #{tpu_custom_call.1} parent=15 // pred_check_branch
        %231 = sbr.rel (%p229) target = $region32
      $region31: #{tpu_custom_call.1} parent=15 // pred_region
        %p232 = scmp.lt.s32.totalorder %s18, 7
        %s233 = scalar_select %p232, %s18, 7
        %s234 = smul.addr %s233, 2
        %s235 = smul.addr %s234, 2
        %s236 = scalar_lea.vmem %s3, %s235
      $region32: #{tpu_custom_call.1} parent=15 // pred_fallthru
        _
      // Predicated region
      $region33: #{tpu_custom_call.1} parent=15 // pred_check
        %p237 = pneg %p149
      $region34: #{tpu_custom_call.1} parent=15 // pred_check_branch
        %239 = sbr.rel (%p237) target = $region36
      $region35: #{tpu_custom_call.1} parent=15 // pred_region
        %p240 = scmp.lt.s32.totalorder %s18, 7
        %s241 = scalar_select %p240, %s18, 7
        %s242 = smul.addr %s241, 2
        %s243 = smul.addr %s242, 4
        %s244 = scalar_lea.vmem %s4, %s243
      $region36: #{tpu_custom_call.1} parent=15 // pred_fallthru
        _
    $region16: #{tpu_custom_call.1} parent=5 // pred_fallthru
      _
    %p245 = scmp.le.s32.totalorder 1, %s11
    %p246 = scmp.lt.s32.totalorder %s11, 17
    %p247 = pnand %p245, %p246
    %p248 = pneg %p247
    // Predicated region
    $region37: #{tpu_custom_call.1} parent=5 // pred_check
      _
    $region38: #{tpu_custom_call.1} parent=5 // pred_check_branch
      %250 = sbr.rel (%p247) target = $region40
    $region39: #{tpu_custom_call.1} parent=5 // pred_region
      %s251 = ssub.s32 %s11, 1
      %p252 = scmp.lt.s32.totalorder %s21, 1
      %s253 = scalar_select %p252, %s21, 1
      %p254 = scmp.lt.s32.totalorder %s20, 7
      %s255 = scalar_select %p254, %s20, 7
      %s256 = smul.addr %s253, 8
      %s257 = sadd.s32 %s255, %s256
      %s258 = smul.addr %s257, 2
      %s259 = scalar_lea.vmem %s0, %s258
      %p260 = pneg %p51
      %p261 = pneg %p48
      %p262 = scmp.lt.s32.totalorder %s20, 7
      %s263 = scalar_select %p262, %s20, 7
      %s264 = smul.addr %s263, 4
      %s265 = smul.addr %s264, 4
      %s266 = scalar_lea.vmem %s1, %s265
      %p267 = pneg %p77
      %p268 = pneg %p74
      %p269 = scmp.lt.s32.totalorder %s20, 7
      %s270 = scalar_select %p269, %s20, 7
      %s271 = smul.addr %s270, 4
      %s272 = smul.addr %s271, 8
      %s273 = scalar_lea.vmem %s2, %s272
      %p274 = pneg %p103
      %p275 = pneg %p100
      %p276 = scmp.lt.s32.totalorder %s20, 7
      %s277 = scalar_select %p276, %s20, 7
      %s278 = smul.addr %s277, 2
      %s279 = smul.addr %s278, 2
      %s280 = scalar_lea.vmem %s3, %s279
      %p281 = pneg %p129
      %p282 = pneg %p126
      %p283 = scmp.lt.s32.totalorder %s20, 7
      %s284 = scalar_select %p283, %s20, 7
      %s285 = smul.addr %s284, 2
      %s286 = smul.addr %s285, 4
      %s287 = scalar_lea.vmem %s4, %s286
      %p288 = pneg %p155
      %p289 = pneg %p152
      %p290 = pneg %p183
      %p291 = pneg %p180
      %p292 = scmp.lt.s32.totalorder %s20, 7
      %s293 = scalar_select %p292, %s20, 7
      %p294 = scmp.lt.s32.totalorder %s21, 1
      %s295 = scalar_select %p294, %s21, 1
      %s296 = smul.addr %s293, 2
      %s297 = sadd.s32 %s295, %s296
      %s298 = smul.addr %s297, 4
      %s299 = scalar_lea.vmem %s5, %s298
      %p300 = scmp.lt.s32.totalorder %s21, 1
      %s301 = scalar_select %p300, %s21, 1
      %p302 = scmp.lt.s32.totalorder %s20, 7
      %s303 = scalar_select %p302, %s20, 7
      %s304 = smul.addr %s301, 8
      %s305 = sadd.s32 %s303, %s304
      %s306 = smul.addr %s305, 2
      %s307 = scalar_lea.vmem %s0, %s306
      %p308 = scmp.lt.s32.totalorder %s20, 7
      %s309 = scalar_select %p308, %s20, 7
      %s310 = smul.addr %s309, 4
      %s311 = smul.addr %s310, 4
      %s312 = scalar_lea.vmem %s1, %s311
      %p313 = scmp.lt.s32.totalorder %s20, 7
      %s314 = scalar_select %p313, %s20, 7
      %s315 = smul.addr %s314, 4
      %s316 = smul.addr %s315, 8
      %s317 = scalar_lea.vmem %s2, %s316
      %p318 = scmp.lt.s32.totalorder %s20, 7
      %s319 = scalar_select %p318, %s20, 7
      %s320 = smul.addr %s319, 2
      %s321 = smul.addr %s320, 2
      %s322 = scalar_lea.vmem %s3, %s321
      %p323 = scmp.lt.s32.totalorder %s20, 7
      %s324 = scalar_select %p323, %s20, 7
      %s325 = smul.addr %s324, 2
      %s326 = smul.addr %s325, 4
      %s327 = scalar_lea.vmem %s4, %s326
      %p328 = scmp.lt.s32.totalorder %s20, 7
      %s329 = scalar_select %p328, %s20, 7
      %p330 = scmp.lt.s32.totalorder %s21, 1
      %s331 = scalar_select %p330, %s21, 1
      %s332 = smul.addr %s329, 2
      %s333 = sadd.s32 %s331, %s332
      %s334 = smul.addr %s333, 4
      %s335 = scalar_lea.vmem %s5, %s334
      %v337 = vld [vmem:[%s307] sm:$0x3]
      %v338 = vld [vmem:[%s312] sm:$0xf]
      %v339 = vld [vmem:[%s312 + $0x4] sm:$0xf]
      %v340 = vld [vmem:[%s312 + $0x8] sm:$0xf]
      %v341 = vld [vmem:[%s312 + $0xc] sm:$0xf]
      %v342 = vld [vmem:[%s317] sm:$0xff]
      %v343 = vld [vmem:[%s317 + $0x8] sm:$0xff]
      %v344 = vld [vmem:[%s317 + $0x10] sm:$0xff]
      %v345 = vld [vmem:[%s317 + $0x18] sm:$0xff]
      %347 = vset.pattern.permute.xlu0 0
      %348 = vperm.xlu0 %347, %v342
      %v349 = vpop.permute.xlu0 %348
      %352 = vset.pattern.permute.xlu0 0
      %353 = vperm.xlu0 %352, %v343
      %v354 = vpop.permute.xlu0 %353
      %357 = vset.pattern.permute.xlu0 0
      %358 = vperm.xlu0 %357, %v344
      %v359 = vpop.permute.xlu0 %358
      %362 = vset.pattern.permute.xlu0 0
      %363 = vperm.xlu0 %362, %v345
      %v364 = vpop.permute.xlu0 %363
      %v370 = vunpack.c.l.b16 %v338
      %v371 = vunpack.c.l.b16 %v339
      %v372 = vunpack.c.l.b16 %v340
      %v373 = vunpack.c.l.b16 %v341
      %v374 = vpack.c.b16 %v371, %v370
      %v375 = vpack.c.b16 %v373, %v372
      %vm376 = vcmask 31744
      %v378 = vsel %vm376, %v374, 0
      %v381 = vsel %vm376, %v375, 0
      %vm383 = vcmask 1041408
      %v385 = vsel %vm383, %v337, 0
      %387 = vmatprep.subr.bf16.mxu0 0
      %388 = vmatpush1.bf16.msra.mxu0 %v385
      %389 = vmatprep.subr.bf16.mxu0 0
      %390 = vmatpush1.bf16.msra.mxu0 0
      %391 = vmatprep.subr.bf16.mxu0 0
      %392 = vmatpush1.bf16.msra.mxu0 0
      %393 = vmatprep.subr.bf16.mxu0 0
      %394 = vmatpush1.bf16.msra.mxu0 0
      %395 = vmatprep.subr.bf16.mxu0 0
      %396 = vmatpush1.bf16.msra.mxu0 0
      %397 = vmatprep.subr.bf16.mxu0 0
      %398 = vmatpush1.bf16.msra.mxu0 0
      %399 = vmatprep.subr.bf16.mxu0 0
      %400 = vmatpush1.bf16.msra.mxu0 0
      %401 = vmatprep.subr.bf16.mxu0 0
      %402 = vmatpush1.bf16.msra.mxu0 0
      %403 = vmatprep.subr.bf16.mxu0 0
      %404 = vmatpush1.bf16.msra.mxu0 0
      %405 = vmatprep.subr.bf16.mxu0 0
      %406 = vmatpush1.bf16.msra.mxu0 0
      %407 = vmatprep.subr.bf16.mxu0 0
      %408 = vmatpush1.bf16.msra.mxu0 0
      %409 = vmatprep.subr.bf16.mxu0 0
      %410 = vmatpush1.bf16.msra.mxu0 0
      %411 = vmatprep.subr.bf16.mxu0 0
      %412 = vmatpush1.bf16.msra.mxu0 0
      %413 = vmatprep.subr.bf16.mxu0 0
      %414 = vmatpush1.bf16.msra.mxu0 0
      %415 = vmatprep.subr.bf16.mxu0 0
      %416 = vmatpush1.bf16.msra.mxu0 0
      %417 = vmatprep.subr.bf16.mxu0 0
      %418 = vmatpush1.bf16.msra.mxu0 0
      %419 = vmatprep.mubr.bf16.mxu0 0
      %420 = vmatmul.mubr.bf16.gmra.mrb[0].mxu0 %v378
      %v421 = vpop.f32.mrb[0].mxu0
      %v422 = vadd.f32 %v349, %v421
      %v423 = vpop.f32.mrb[0].mxu0
      %v424 = vpop.f32.mrb[0].mxu0
      %v425 = vadd.f32 %v354, %v424
      %v426 = vpop.f32.mrb[0].mxu0
      %427 = vmatprep.mubr.bf16.mxu0 0
      %428 = vmatmul.mubr.bf16.gmra.mrb[0].mxu0 %v381
      %v429 = vpop.f32.mrb[0].mxu0
      %v430 = vadd.f32 %v359, %v429
      %v431 = vpop.f32.mrb[0].mxu0
      %v432 = vpop.f32.mrb[0].mxu0
      %v433 = vadd.f32 %v364, %v432
      %v434 = vpop.f32.mrb[0].mxu0
      %435 = vdwg.mxu0
      %v436 = vtanh.pop %v422
      %v437 = vtanh.pop %v425
      %v438 = vtanh.pop %v430
      %v439 = vtanh.pop %v433
      %v440 = vpack.c.bf16 %v437, %v436
      %v441 = vpack.c.bf16 %v439, %v438
      %v442 = vunpack.c.l.bf16 %v337
      %v443 = vlaneseq
      %v444 = vand.u32 %v443, 127
      %vm445 = vcmp.lt.s32.totalorder %v444, 16
      %v446 = vsel %vm445, 0.0, -1e+30
      %v447 = vld [vmem:[%s322] sm:$0x3]
      %v448 = vld [vmem:[%s327] sm:$0xf]
      %450 = vset.pattern.permute.xlu0 0
      %451 = vperm.xlu0 %450, %v448
      %v452 = vpop.permute.xlu0 %451
      %vm454 = vcmask 130048
      %v456 = vsel %vm454, %v447, 0
      %458 = vmatprep.subr.bf16.mxu0 0
      %459 = vmatpush1.bf16.msra.mxu0 %v440
      %460 = vmatprep.subr.bf16.mxu0 0
      %461 = vmatpush1.bf16.msra.mxu0 0
      %462 = vmatprep.subr.bf16.mxu0 0
      %463 = vmatpush1.bf16.msra.mxu0 0
      %464 = vmatprep.subr.bf16.mxu0 0
      %465 = vmatpush1.bf16.msra.mxu0 0
      %466 = vmatprep.subr.bf16.mxu0 0
      %467 = vmatpush1.bf16.msra.mxu0 0
      %468 = vmatprep.subr.bf16.mxu0 0
      %469 = vmatpush1.bf16.msra.mxu0 0
      %470 = vmatprep.subr.bf16.mxu0 0
      %471 = vmatpush1.bf16.msra.mxu0 0
      %472 = vmatprep.subr.bf16.mxu0 0
      %473 = vmatpush1.bf16.msra.mxu0 0
      %474 = vmatprep.subr.bf16.mxu0 0
      %475 = vmatpush1.bf16.msra.mxu0 0
      %476 = vmatprep.subr.bf16.mxu0 0
      %477 = vmatpush1.bf16.msra.mxu0 0
      %478 = vmatprep.subr.bf16.mxu0 0
      %479 = vmatpush1.bf16.msra.mxu0 0
      %480 = vmatprep.subr.bf16.mxu0 0
      %481 = vmatpush1.bf16.msra.mxu0 0
      %482 = vmatprep.subr.bf16.mxu0 0
      %483 = vmatpush1.bf16.msra.mxu0 0
      %484 = vmatprep.subr.bf16.mxu0 0
      %485 = vmatpush1.bf16.msra.mxu0 0
      %486 = vmatprep.subr.bf16.mxu0 0
      %487 = vmatpush1.bf16.msra.mxu0 0
      %488 = vmatprep.subr.bf16.mxu0 0
      %489 = vmatpush1.bf16.msra.mxu0 0
      %490 = vmatprep.mubr.bf16.mxu0 0
      %491 = vmatmul.mubr.bf16.gmra.mrb[0].mxu0 %v456
      %v492 = vpop.f32.mrb[0].mxu0
      %v493 = vadd.f32 %v452, %v492
      %v494 = vpop.f32.mrb[0].mxu0
      %v495 = vpop.f32.mrb[0].mxu0
      %v496 = vpop.f32.mrb[0].mxu0
      %497 = vdwg.mxu0
      %v498 = vadd.f32 %v493, %v446
      %vm499 = vcmask 1043456
      %v500 = vsel %vm499, %v498, -inf
      %501 = vmax.xlane.f32.xlu0 %v500
      %v502 = vpop.xlane.xlu0 %501
      %v503 = vsub.f32 %v498, %v502
      %v504 = vmul.f32 %v503, 1.442695
      %v505 = vpow.pop %v504
      %v506 = vsel %vm499, %v505, 0.0
      %507 = vadd.xlane.f32.xlu0 %v506
      %v508 = vpop.xlane.xlu0 %507
      %v509 = vrcp.pop %v508
      %v510 = vmul.f32 %v505, %v509
      %v511 = vmul.f32 %v510, %v442
      %v512 = vsel %vm499, %v511, 0.0
      %513 = vadd.xlane.f32.xlu0 %v512
      %v514 = vpop.xlane.xlu0 %513
      %v515 = vmul.f32 %v511, %v442
      %v516 = vsel %vm499, %v515, 0.0
      %517 = vadd.xlane.f32.xlu0 %v516
      %v518 = vpop.xlane.xlu0 %517
      %v519 = vmul.f32 %v514, %v514
      %v520 = vsub.f32 %v518, %v519
      %v521 = vmax.f32 %v520, 1e-07
      %v522 = vrsqrt.pop %v521
      %v523 = vmul.f32 %v521, %v522
      %vm524 = vcmp.eq.f32.partialorder %v521, inf
      %v525 = vsel %vm524, %v521, %v523
      %vm526 = vcmp.eq.f32.partialorder %v521, 0.0
      %v527 = vand.u32 %v521, 2147483648
      %v528 = vsel %vm526, %v527, %v525
      %vm529 = vcmask 3072
      %530 = vst.msk [vmem:[%s335] sm:$0xf] %vm529, %v514
      %vm531 = vcmask 11272
      %532 = vst.msk [vmem:[%s335] sm:$0xf] %vm531, %v528
      %s533 = scalar_lea.vmem %s322, 2
      %v534 = vld [vmem:[%s533] sm:$0x3]
      %s535 = scalar_lea.vmem %s327, 4
      %v536 = vld [vmem:[%s535] sm:$0xf]
      %538 = vset.pattern.permute.xlu0 0
      %539 = vperm.xlu0 %538, %v536
      %v540 = vpop.permute.xlu0 %539
      %v543 = vsel %vm454, %v534, 0
      %545 = vmatprep.subr.bf16.mxu0 0
      %546 = vmatpush1.bf16.msra.mxu0 %v441
      %547 = vmatprep.subr.bf16.mxu0 0
      %548 = vmatpush1.bf16.msra.mxu0 0
      %549 = vmatprep.subr.bf16.mxu0 0
      %550 = vmatpush1.bf16.msra.mxu0 0
      %551 = vmatprep.subr.bf16.mxu0 0
      %552 = vmatpush1.bf16.msra.mxu0 0
      %553 = vmatprep.subr.bf16.mxu0 0
      %554 = vmatpush1.bf16.msra.mxu0 0
      %555 = vmatprep.subr.bf16.mxu0 0
      %556 = vmatpush1.bf16.msra.mxu0 0
      %557 = vmatprep.subr.bf16.mxu0 0
      %558 = vmatpush1.bf16.msra.mxu0 0
      %559 = vmatprep.subr.bf16.mxu0 0
      %560 = vmatpush1.bf16.msra.mxu0 0
      %561 = vmatprep.subr.bf16.mxu0 0
      %562 = vmatpush1.bf16.msra.mxu0 0
      %563 = vmatprep.subr.bf16.mxu0 0
      %564 = vmatpush1.bf16.msra.mxu0 0
      %565 = vmatprep.subr.bf16.mxu0 0
      %566 = vmatpush1.bf16.msra.mxu0 0
      %567 = vmatprep.subr.bf16.mxu0 0
      %568 = vmatpush1.bf16.msra.mxu0 0
      %569 = vmatprep.subr.bf16.mxu0 0
      %570 = vmatpush1.bf16.msra.mxu0 0
      %571 = vmatprep.subr.bf16.mxu0 0
      %572 = vmatpush1.bf16.msra.mxu0 0
      %573 = vmatprep.subr.bf16.mxu0 0
      %574 = vmatpush1.bf16.msra.mxu0 0
      %575 = vmatprep.subr.bf16.mxu0 0
      %576 = vmatpush1.bf16.msra.mxu0 0
      %577 = vmatprep.mubr.bf16.mxu0 0
      %578 = vmatmul.mubr.bf16.gmra.mrb[0].mxu0 %v543
      %v579 = vpop.f32.mrb[0].mxu0
      %v580 = vadd.f32 %v540, %v579
      %v581 = vpop.f32.mrb[0].mxu0
      %v582 = vpop.f32.mrb[0].mxu0
      %v583 = vpop.f32.mrb[0].mxu0
      %584 = vdwg.mxu0
      %v585 = vadd.f32 %v580, %v446
      %v586 = vsel %vm499, %v585, -inf
      %587 = vmax.xlane.f32.xlu0 %v586
      %v588 = vpop.xlane.xlu0 %587
      %v589 = vsub.f32 %v585, %v588
      %v590 = vmul.f32 %v589, 1.442695
      %v591 = vpow.pop %v590
      %v592 = vsel %vm499, %v591, 0.0
      %593 = vadd.xlane.f32.xlu0 %v592
      %v594 = vpop.xlane.xlu0 %593
      %v595 = vrcp.pop %v594
      %v596 = vmul.f32 %v591, %v595
      %v597 = vmul.f32 %v596, %v442
      %v598 = vsel %vm499, %v597, 0.0
      %599 = vadd.xlane.f32.xlu0 %v598
      %v600 = vpop.xlane.xlu0 %599
      %v601 = vmul.f32 %v597, %v442
      %v602 = vsel %vm499, %v601, 0.0
      %603 = vadd.xlane.f32.xlu0 %v602
      %v604 = vpop.xlane.xlu0 %603
      %v605 = vmul.f32 %v600, %v600
      %v606 = vsub.f32 %v604, %v605
      %v607 = vmax.f32 %v606, 1e-07
      %v608 = vrsqrt.pop %v607
      %v609 = vmul.f32 %v607, %v608
      %vm610 = vcmp.eq.f32.partialorder %v607, inf
      %v611 = vsel %vm610, %v607, %v609
      %vm612 = vcmp.eq.f32.partialorder %v607, 0.0
      %v613 = vand.u32 %v607, 2147483648
      %v614 = vsel %vm612, %v613, %v611
      %vm615 = vcmask 19472
      %616 = vst.msk [vmem:[%s335] sm:$0xf] %vm615, %v600
      %vm617 = vcmask 27672
      %618 = vst.msk [vmem:[%s335] sm:$0xf] %vm617, %v614
      %p619 = scmp.lt.s32.totalorder %s20, 7
      %s620 = scalar_select %p619, %s20, 7
      %p621 = scmp.lt.s32.totalorder %s21, 1
      %s622 = scalar_select %p621, %s21, 1
      %s623 = smul.addr %s620, 2
      %s624 = sadd.s32 %s622, %s623
      %s625 = smul.addr %s624, 4
      %s626 = scalar_lea.vmem %s5, %s625
      // Predicated region
      $region41: #{tpu_custom_call.1} parent=39 // pred_check
        %p627 = pneg %p180
      $region42: #{tpu_custom_call.1} parent=39 // pred_check_branch
        %629 = sbr.rel (%p627) target = $region44
      $region43: #{tpu_custom_call.1} parent=39 // pred_region
        _
      $region44: #{tpu_custom_call.1} parent=39 // pred_fallthru
        _
    $region40: #{tpu_custom_call.1} parent=5 // pred_fallthru
      _
    %p630 = scmp.le.s32.totalorder 2, %s11
    // Predicated region
    $region45: #{tpu_custom_call.1} parent=5 // pred_check
      %p631 = pneg %p630
    $region46: #{tpu_custom_call.1} parent=5 // pred_check_branch
      %633 = sbr.rel (%p631) target = $region48
    $region47: #{tpu_custom_call.1} parent=5 // pred_region
      %s634 = ssub.s32 %s11, 2
      // Predicated region
      $region49: #{tpu_custom_call.1} parent=47 // pred_check
        %p635 = pneg %p186
      $region50: #{tpu_custom_call.1} parent=47 // pred_check_branch
        %637 = sbr.rel (%p635) target = $region52
      $region51: #{tpu_custom_call.1} parent=47 // pred_region
        %p638 = scmp.lt.s32.totalorder %s22, 7
        %s639 = scalar_select %p638, %s22, 7
        %p640 = scmp.lt.s32.totalorder %s23, 1
        %s641 = scalar_select %p640, %s23, 1
        %s642 = smul.addr %s639, 2
        %s643 = sadd.s32 %s641, %s642
        %s644 = smul.addr %s643, 4
        %s645 = scalar_lea.vmem %s5, %s644
      $region52: #{tpu_custom_call.1} parent=47 // pred_fallthru
        _
    $region48: #{tpu_custom_call.1} parent=5 // pred_fallthru
      _
  $region6: #{tpu_custom_call.1} parent=0 // loop_footer
    %s15 = sadd.s32 1, %s11
  $region7: #{tpu_custom_call.1} parent=0 // loop_footer_branch
    %10 = sbr.rel target = $region3
  $region8: #{tpu_custom_call.1} parent=0 // loop_exit
    _

</llo_original>
